<compile_context>
chip_gen: v7x
topology: tpu7x:2x2x1
jax: 0.10.0
libtpu: 0.0.40
codegen_flags: <defaults>
</compile_context>

<pallas_src>
import functools

import jax
import jax.numpy as jnp
from jax import lax
from jax.experimental import pallas as pl
from jax.experimental.pallas import tpu as pltpu


def _pcloss_partial_kernel(pred_ref, true_ref, ord_ref, sl1_ref, *,
                           L, tile_l, needs_mask):
    """Accumulates per-channel partial sums for one (C, tile_l) tile.

    pred_ref/true_ref: (C, tile_l) native dtype (batch dim squeezed by BlockSpec)
    ord_ref: (C-1, 1) f32 -- running sum over L of relu(pred[c-1] - pred[c])
    sl1_ref: (C,   1) f32 -- running per-channel sum of smooth-L1 terms
    Output blocks stay resident across the L-tile ("arbitrary") grid axis.
    """
    t = pl.program_id(1)

    @pl.when(t == 0)
    def _init():
        ord_ref[...] = jnp.zeros_like(ord_ref)
        sl1_ref[...] = jnp.zeros_like(sl1_ref)

    x = pred_ref[...]          # (C, tile_l), native dtype (bf16 stays packed)
    y = true_ref[...]

    # ---- pairwise channel ordering penalty, all (c-1, c) pairs at once ----
    r = jnp.maximum((x[:-1, :] - x[1:, :]).astype(jnp.float32), 0.0)   # (C-1, tile_l)

    # ---- smooth-L1 (Huber, beta=1.0) elementwise terms, fused on same tile ----
    diff = (x - y).astype(jnp.float32)                                 # (C, tile_l)
    adiff = jnp.abs(diff)
    sl1 = jnp.where(adiff < 1.0, 0.5 * diff * diff, adiff - 0.5)

    if needs_mask:
        # Last L tile may extend past L; zero out contributions from OOB lanes.
        lane = lax.broadcasted_iota(jnp.int32, (1, tile_l), 1)
        valid = (t * tile_l + lane) < L                                # (1, tile_l)
        r = jnp.where(valid, r, 0.0)
        sl1 = jnp.where(valid, sl1, 0.0)

    ord_ref[...] += jnp.sum(r, axis=-1, keepdims=True)                 # (C-1, 1)
    sl1_ref[...] += jnp.sum(sl1, axis=-1, keepdims=True)               # (C, 1)


def pcloss_pallas(y_pred, y_true, *, max_tile_lanes=None):
    assert y_pred.shape == y_true.shape
    B, C, L = y_pred.shape
    assert C >= 2, "pcloss needs at least 2 channels"
    itemsize = jnp.dtype(y_pred.dtype).itemsize

    if max_tile_lanes is None:
        # ~4 MiB per input tile; 2 inputs x 2 pipeline buffers ~= 16 MiB VMEM.
        max_tile_lanes = max(128, ((4 << 20) // max(1, C * itemsize)) // 128 * 128)

    if L <= max_tile_lanes:
        tile_l = L                      # full-extent block: no 128-divisibility needed
        num_l_tiles = 1
        needs_mask = False
    else:
        tile_l = max(128, (max_tile_lanes // 128) * 128)
        num_l_tiles = pl.cdiv(L, tile_l)
        needs_mask = (L % tile_l) != 0

    kernel = functools.partial(_pcloss_partial_kernel,
                               L=L, tile_l=tile_l, needs_mask=needs_mask)

    in_spec = pl.BlockSpec((None, C, tile_l), lambda b, t: (b, 0, t))

    ord_out, sl1_out = pl.pallas_call(
        kernel,
        grid=(B, num_l_tiles),
        in_specs=[in_spec, in_spec],
        out_specs=[
            pl.BlockSpec((None, C - 1, 1), lambda b, t: (b, 0, 0)),
            pl.BlockSpec((None, C, 1), lambda b, t: (b, 0, 0)),
        ],
        out_shape=[
            jax.ShapeDtypeStruct((B, C - 1, 1), jnp.float32),
            jax.ShapeDtypeStruct((B, C, 1), jnp.float32),
        ],
        compiler_params=pltpu.CompilerParams(
            dimension_semantics=("parallel", "arbitrary"),
            vmem_limit_bytes=32 * 1024 * 1024,
        ),
        cost_estimate=pl.CostEstimate(
            flops=8 * B * C * L,
            transcendentals=0,
            bytes_accessed=2 * B * C * L * itemsize,
        ),
    )(y_pred, y_true)

    # Tiny global combine in plain JAX: sum partials across ALL tiles/batches
    # first, then mean -> square -> normalize (order matters for correctness).
    ord_sums = jnp.sum(ord_out[:, :, 0], axis=0)            # (C-1,)
    ord_means = ord_sums / jnp.float32(B * L)
    loss1 = jnp.sum(ord_means * ord_means) / jnp.float32(C - 1)
    loss2 = jnp.sum(sl1_out) / jnp.float32(B * C * L)
    return (loss1 + loss2).astype(jnp.float32)


def pcloss_reference(y_pred, y_true):
    """Pure-JAX reference mirroring the PyTorch forward exactly."""
    B, C, L = y_pred.shape
    x = y_pred.astype(jnp.float32)
    t = y_true.astype(jnp.float32)
    loss = 0.0
    for i in range(1, C):
        l = jnp.square(jnp.mean(jax.nn.relu(-(x[:, i, :] - x[:, i - 1, :]))))
        loss = loss + l
    diff = x - t
    adiff = jnp.abs(diff)
    sl1 = jnp.mean(jnp.where(adiff < 1.0, 0.5 * diff * diff, adiff - 0.5))
    return loss / (C - 1) + sl1


if __name__ == "__main__":
    key = jax.random.PRNGKey(0)
    k1, k2, k3, k4 = jax.random.split(key, 4)

    pcloss_jit = jax.jit(pcloss_pallas)
    # Force a small lane tile to exercise the tiled + masked accumulation path.
    pcloss_tiled_jit = jax.jit(functools.partial(pcloss_pallas, max_tile_lanes=256))

    # Small shape consistent with the module's (B, C, L) inputs.
    B, C, L = 2, 4, 16
    y_pred = jax.random.normal(k1, (B, C, L), dtype=jnp.float32)
    y_true = jax.random.normal(k2, (B, C, L), dtype=jnp.float32)

    out = jax.block_until_ready(pcloss_jit(y_pred, y_true))
    ref = jax.block_until_ready(pcloss_reference(y_pred, y_true))
    assert jnp.allclose(out, ref, rtol=1e-4, atol=1e-5), (out, ref)

    # Larger shape: 4 L-tiles of 256 (last one partial -> in-kernel masking),
    # batch axis sharded across cores via the "parallel" grid dimension.
    B2, C2, L2 = 3, 5, 1000
    yp2 = jax.random.normal(k3, (B2, C2, L2), dtype=jnp.float32)
    yt2 = jax.random.normal(k4, (B2, C2, L2), dtype=jnp.float32)
    out2 = jax.block_until_ready(pcloss_tiled_jit(yp2, yt2))
    ref2 = jax.block_until_ready(pcloss_reference(yp2, yt2))
    assert jnp.allclose(out2, ref2, rtol=1e-4, atol=1e-5), (out2, ref2)

    # Same large shape through the default (untiled-L) path as a cross-check.
    out3 = jax.block_until_ready(pcloss_jit(yp2, yt2))
    assert jnp.allclose(out3, ref2, rtol=1e-4, atol=1e-5), (out3, ref2)

    print("KERNEL_OK")
</pallas_src>

<mosaic_0001>
module attributes {stable_mosaic.version = 11 : i64} {
  func.func @_pcloss_partial_kernel(%arg0: i32, %arg1: i32, %arg2: memref<1x4x16xf32, #tpu.memory_space<vmem>>, %arg3: memref<1x4x16xf32, #tpu.memory_space<vmem>>, %arg4: memref<1x3x1xf32, #tpu.memory_space<vmem>>, %arg5: memref<1x4x1xf32, #tpu.memory_space<vmem>>) attributes {dimension_semantics = [#tpu.dimension_semantics<parallel>, #tpu.dimension_semantics<arbitrary>], iteration_bounds = array<i64: 2, 1>, scalar_prefetch = 0 : i64, scratch_operands = 0 : i64, tpu.core_type = #tpu.core_type<tc>, window_params = [{transform_indices = @transform_0, window_bounds = array<i64: 1, 4, 16>}, {transform_indices = @transform_1, window_bounds = array<i64: 1, 4, 16>}, {transform_indices = @transform_2, window_bounds = array<i64: 1, 3, 1>}, {transform_indices = @transform_3, window_bounds = array<i64: 1, 4, 1>}]} {
    %c0_i32 = arith.constant 0 : i32
    %0 = arith.cmpi eq, %arg1, %c0_i32 : i32
    %1 = arith.extui %0 : i1 to i32
    %c0_i32_0 = arith.constant 0 : i32
    %2 = arith.cmpi ne, %1, %c0_i32_0 : i32
    scf.if %2 {
      %cst_23 = arith.constant 0.000000e+00 : f32
      %38 = vector.broadcast %cst_23 : f32 to vector<3x1xf32>
      %c0_24 = arith.constant 0 : index
      %c0_25 = arith.constant 0 : index
      %c0_26 = arith.constant 0 : index
      %39 = vector.load %arg4[%c0_24, %c0_25, %c0_26] : memref<1x3x1xf32, #tpu.memory_space<vmem>>, vector<1x3x1xf32>
      %40 = vector.shape_cast %39 : vector<1x3x1xf32> to vector<3x1xf32>
      %41 = vector.shape_cast %38 : vector<3x1xf32> to vector<1x3x1xf32>
      tpu.vector_store %arg4[%c0_24, %c0_25, %c0_26], %41 {strides = array<i32>} : memref<1x3x1xf32, #tpu.memory_space<vmem>>, vector<1x3x1xf32>,
      %cst_27 = arith.constant 0.000000e+00 : f32
      %42 = vector.broadcast %cst_27 : f32 to vector<4x1xf32>
      %c0_28 = arith.constant 0 : index
      %c0_29 = arith.constant 0 : index
      %c0_30 = arith.constant 0 : index
      %43 = vector.load %arg5[%c0_28, %c0_29, %c0_30] : memref<1x4x1xf32, #tpu.memory_space<vmem>>, vector<1x4x1xf32>
      %44 = vector.shape_cast %43 : vector<1x4x1xf32> to vector<4x1xf32>
      %45 = vector.shape_cast %42 : vector<4x1xf32> to vector<1x4x1xf32>
      tpu.vector_store %arg5[%c0_28, %c0_29, %c0_30], %45 {strides = array<i32>} : memref<1x4x1xf32, #tpu.memory_space<vmem>>, vector<1x4x1xf32>,
    } else {
    }
    %c0 = arith.constant 0 : index
    %c0_1 = arith.constant 0 : index
    %c0_2 = arith.constant 0 : index
    %3 = vector.load %arg2[%c0, %c0_1, %c0_2] : memref<1x4x16xf32, #tpu.memory_space<vmem>>, vector<1x4x16xf32>
    %4 = vector.shape_cast %3 : vector<1x4x16xf32> to vector<4x16xf32>
    %c0_3 = arith.constant 0 : index
    %c0_4 = arith.constant 0 : index
    %c0_5 = arith.constant 0 : index
    %5 = vector.load %arg3[%c0_3, %c0_4, %c0_5] : memref<1x4x16xf32, #tpu.memory_space<vmem>>, vector<1x4x16xf32>
    %6 = vector.shape_cast %5 : vector<1x4x16xf32> to vector<4x16xf32>
    %7 = vector.extract_strided_slice %4 {offsets = [0, 0], sizes = [3, 16], strides = [1, 1]} : vector<4x16xf32> to vector<3x16xf32>
    %8 = vector.extract_strided_slice %4 {offsets = [1, 0], sizes = [3, 16], strides = [1, 1]} : vector<4x16xf32> to vector<3x16xf32>
    %9 = arith.subf %7, %8 : vector<3x16xf32>
    %cst = arith.constant 0.000000e+00 : f32
    %10 = vector.broadcast %cst : f32 to vector<3x16xf32>
    %11 = arith.maximumf %9, %10 : vector<3x16xf32>
    %12 = arith.subf %4, %6 : vector<4x16xf32>
    %13 = math.absf %12 : vector<4x16xf32>
    %cst_6 = arith.constant 1.000000e+00 : f32
    %14 = vector.broadcast %cst_6 : f32 to vector<4x16xf32>
    %15 = arith.cmpf olt, %13, %14 : vector<4x16xf32>
    %cst_7 = arith.constant 5.000000e-01 : f32
    %16 = vector.broadcast %cst_7 : f32 to vector<4x16xf32>
    %17 = arith.mulf %16, %12 : vector<4x16xf32>
    %18 = arith.mulf %17, %12 : vector<4x16xf32>
    %cst_8 = arith.constant 5.000000e-01 : f32
    %19 = vector.broadcast %cst_8 : f32 to vector<4x16xf32>
    %20 = arith.subf %13, %19 : vector<4x16xf32>
    %21 = arith.select %15, %18, %20 : vector<4x16xi1>, vector<4x16xf32>
    %c0_9 = arith.constant 0 : index
    %c0_10 = arith.constant 0 : index
    %c0_11 = arith.constant 0 : index
    %22 = vector.load %arg4[%c0_9, %c0_10, %c0_11] : memref<1x3x1xf32, #tpu.memory_space<vmem>>, vector<1x3x1xf32>
    %23 = vector.shape_cast %22 : vector<1x3x1xf32> to vector<3x1xf32>
    %cst_12 = arith.constant dense<0.000000e+00> : vector<3xf32>
    %24 = vector.multi_reduction <add>, %11, %cst_12 [1] : vector<3x16xf32> to vector<3xf32>
    %25 = vector.shape_cast %24 : vector<3xf32> to vector<3x1xf32>
    %26 = arith.addf %23, %25 : vector<3x1xf32>
    %c0_13 = arith.constant 0 : index
    %c0_14 = arith.constant 0 : index
    %c0_15 = arith.constant 0 : index
    %27 = vector.load %arg4[%c0_13, %c0_14, %c0_15] : memref<1x3x1xf32, #tpu.memory_space<vmem>>, vector<1x3x1xf32>
    %28 = vector.shape_cast %27 : vector<1x3x1xf32> to vector<3x1xf32>
    %29 = vector.shape_cast %26 : vector<3x1xf32> to vector<1x3x1xf32>
    tpu.vector_store %arg4[%c0_13, %c0_14, %c0_15], %29 {strides = array<i32>} : memref<1x3x1xf32, #tpu.memory_space<vmem>>, vector<1x3x1xf32>,
    %c0_16 = arith.constant 0 : index
    %c0_17 = arith.constant 0 : index
    %c0_18 = arith.constant 0 : index
    %30 = vector.load %arg5[%c0_16, %c0_17, %c0_18] : memref<1x4x1xf32, #tpu.memory_space<vmem>>, vector<1x4x1xf32>
    %31 = vector.shape_cast %30 : vector<1x4x1xf32> to vector<4x1xf32>
    %cst_19 = arith.constant dense<0.000000e+00> : vector<4xf32>
    %32 = vector.multi_reduction <add>, %21, %cst_19 [1] : vector<4x16xf32> to vector<4xf32>
    %33 = vector.shape_cast %32 : vector<4xf32> to vector<4x1xf32>
    %34 = arith.addf %31, %33 : vector<4x1xf32>
    %c0_20 = arith.constant 0 : index
    %c0_21 = arith.constant 0 : index
    %c0_22 = arith.constant 0 : index
    %35 = vector.load %arg5[%c0_20, %c0_21, %c0_22] : memref<1x4x1xf32, #tpu.memory_space<vmem>>, vector<1x4x1xf32>
    %36 = vector.shape_cast %35 : vector<1x4x1xf32> to vector<4x1xf32>
    %37 = vector.shape_cast %34 : vector<4x1xf32> to vector<1x4x1xf32>
    tpu.vector_store %arg5[%c0_20, %c0_21, %c0_22], %37 {strides = array<i32>} : memref<1x4x1xf32, #tpu.memory_space<vmem>>, vector<1x4x1xf32>,
    return
  }
  func.func @transform_0(%arg0: i32, %arg1: i32) -> (i32, i32, i32) {
    %c0_i32 = arith.constant 0 : i32
    %c0_i32_0 = arith.constant 0 : i32
    return %arg0, %c0_i32, %arg1 : i32, i32, i32
  }
  func.func @transform_1(%arg0: i32, %arg1: i32) -> (i32, i32, i32) {
    %c0_i32 = arith.constant 0 : i32
    %c0_i32_0 = arith.constant 0 : i32
    return %arg0, %c0_i32, %arg1 : i32, i32, i32
  }
  func.func @transform_2(%arg0: i32, %arg1: i32) -> (i32, i32, i32) {
    %c0_i32 = arith.constant 0 : i32
    %c0_i32_0 = arith.constant 0 : i32
    %c0_i32_1 = arith.constant 0 : i32
    return %arg0, %c0_i32, %c0_i32_0 : i32, i32, i32
  }
  func.func @transform_3(%arg0: i32, %arg1: i32) -> (i32, i32, i32) {
    %c0_i32 = arith.constant 0 : i32
    %c0_i32_0 = arith.constant 0 : i32
    %c0_i32_1 = arith.constant 0 : i32
    return %arg0, %c0_i32, %c0_i32_0 : i32, i32, i32
  }
}

</mosaic_0001>

<llo_original>
// kernel: pcloss_pallas.1
$region0: #{pcloss_pallas.1}
  #allocation0 [shape = 'u32[]', space=smem, size = 0x4, offset = 0x4, fixed_abs, tag = 'smem constant byte address 0x4 - core index']
  #allocation1 [shape = 'u32[144,128]{1,0:T(1,128)}', space=vmem, size = 0x12000, scoped, tag = 'internal scratch']
  %s0 = inlined_call_operand.hbm [shape: f32[2,4,16], index: 0, kind: input, shape index: {}]
  %s1 = inlined_call_operand.hbm [shape: f32[2,4,16], index: 1, kind: input, shape index: {}]
  %s2 = inlined_call_operand.vmem [shape: f32[2,3,1], index: 2, kind: output, shape index: {0}]
  %s3 = inlined_call_operand.vmem [shape: f32[2,4,1], index: 3, kind: output, shape index: {1}]
  %4 = xla_tuple %s2, %s3
  %s5 = sld [smem:[#allocation0]]
  $region61: #{pcloss_pallas.1} parent=0
    _
  %s7 = ssub.s32 1, %s5
  %s8 = scalar_select 0, %s7, %s5
  $region1: #{pcloss_pallas.1} parent=0
    #allocation2 [shape = 'u8[4096]{0}', space=vmem, size = 0x1000, scoped, tag = 'input window, operand 0']
    #allocation3 [shape = 's32[2]{0}', space=sflag, size = 0x8, scoped, tag = 'scoped memory for pcloss_pallas.1']
    #allocation4 [shape = 'u8[4096]{0}', space=vmem, size = 0x1000, scoped, tag = 'input window, operand 1']
    #allocation5 [shape = 's32[2]{0}', space=sflag, size = 0x8, scoped, tag = 'scoped memory for pcloss_pallas.1']
    %9 = vsyncpa [#allocation3], 0
    %s10 = scalar_lea.sflag [#allocation3], 1
    %11 = vsyncpa %s10, 0
    %12 = vsyncpa [#allocation5], 0
    %s13 = scalar_lea.sflag [#allocation5], 1
    %14 = vsyncpa %s13, 0
    loop: start=0, step=1, limit=4
    $region2: #{pcloss_pallas.1} parent=1 // loop_pre_header
      _
    $region3: #{pcloss_pallas.1} parent=1 // loop_header
      %s16 = sphi 0, %s20
      %p17 = scmp.ge.s32.totalorder %s16, 4
      %s23 = sphi 0, %s35
      %s24 = sphi 0, %s31
      %s25 = sphi 0, %s23
      %s26 = sphi 0, %s24
      %s27 = sphi 0, %s25
      %s28 = sphi 0, %s26
      %s40 = sphi 0, %s42
      %s43 = sphi 0, %s40
      %s44 = sphi 0, %s43
      %s60 = sphi 0, %s44
      %s68 = sphi 0, %s70
      %s71 = sphi 0, %s68
      %s72 = sphi 0, %s71
      %s88 = sphi 0, %s72
      %s94 = sphi 0, %s96
      %s97 = sphi 0, %s94
      %s98 = sphi 0, %s97
      %s114 = sphi 0, %s98
      %s120 = sphi 0, %s122
      %s123 = sphi 0, %s120
      %s124 = sphi 0, %s123
      %s140 = sphi 0, %s124
    $region4: #{pcloss_pallas.1} parent=1 // loop_header_branch
      %19 = sbr.rel (%p17) target = $region8
    $region5: #{pcloss_pallas.1} parent=1 // loop_body
      %s21 = ssub.s32 %s16, 1
      %s22 = ssub.s32 %s16, 2
      %s29 = sadd.s32 1, %s24
      %p30 = scmp.ge.s32.totalorder %s29, 1
      %s31 = scalar_select %p30, 0, %s29
      %s32 = sadd.s32 1, %s23
      %s33 = scalar_select %p30, %s32, %s23
      %p34 = scmp.ge.s32.totalorder %s33, 2
      %s35 = scalar_select %p34, 0, %s33
      %s36 = ssub.s32 %s23, %s35
      %s37 = ssub.s32 %s24, %s31
      %s38 = sor.u32 %s36, %s37
      %p39 = scmp.eq.s32.totalorder %s38, 0
      %s41 = sadd.s32 %s40, 1
      %s42 = scalar_select %p39, %s40, %s41
      %p45 = pneg %p39
      %p46 = scmp.eq.s32.totalorder %s16, 1
      %p47 = por %p45, %p46
      %p48 = scmp.ne.s32.totalorder %s40, %s43
      %p49 = scmp.eq.s32.totalorder %s16, 0
      %p50 = por %p48, %p49
      %p51 = scmp.ne.s32.totalorder %s40, %s43
      %p52 = scmp.eq.s32.totalorder %s21, 1
      %p53 = por %p51, %p52
      %p54 = scmp.ne.s32.totalorder %s43, %s44
      %p55 = scmp.eq.s32.totalorder %s21, 0
      %p56 = por %p54, %p55
      %p57 = scmp.ne.s32.totalorder %s43, %s44
      %p58 = scmp.eq.s32.totalorder %s22, 1
      %p59 = por %p57, %p58
      %p61 = scmp.ne.s32.totalorder %s44, %s60
      %p62 = scmp.eq.s32.totalorder %s22, 0
      %p63 = por %p61, %p62
      %s64 = ssub.s32 %s23, %s35
      %s65 = ssub.s32 %s24, %s31
      %s66 = sor.u32 %s64, %s65
      %p67 = scmp.eq.s32.totalorder %s66, 0
      %s69 = sadd.s32 %s68, 1
      %s70 = scalar_select %p67, %s68, %s69
      %p73 = pneg %p67
      %p74 = scmp.eq.s32.totalorder %s16, 1
      %p75 = por %p73, %p74
      %p76 = scmp.ne.s32.totalorder %s68, %s71
      %p77 = scmp.eq.s32.totalorder %s16, 0
      %p78 = por %p76, %p77
      %p79 = scmp.ne.s32.totalorder %s68, %s71
      %p80 = scmp.eq.s32.totalorder %s21, 1
      %p81 = por %p79, %p80
      %p82 = scmp.ne.s32.totalorder %s71, %s72
      %p83 = scmp.eq.s32.totalorder %s21, 0
      %p84 = por %p82, %p83
      %p85 = scmp.ne.s32.totalorder %s71, %s72
      %p86 = scmp.eq.s32.totalorder %s22, 1
      %p87 = por %p85, %p86
      %p89 = scmp.ne.s32.totalorder %s72, %s88
      %p90 = scmp.eq.s32.totalorder %s22, 0
      %p91 = por %p89, %p90
      %s92 = ssub.s32 %s23, %s35
      %p93 = scmp.eq.s32.totalorder %s92, 0
      %s95 = sadd.s32 %s94, 1
      %s96 = scalar_select %p93, %s94, %s95
      %p99 = pneg %p93
      %p100 = scmp.eq.s32.totalorder %s16, 1
      %p101 = por %p99, %p100
      %p102 = scmp.ne.s32.totalorder %s94, %s97
      %p103 = scmp.eq.s32.totalorder %s16, 0
      %p104 = por %p102, %p103
      %p105 = scmp.ne.s32.totalorder %s94, %s97
      %p106 = scmp.eq.s32.totalorder %s21, 1
      %p107 = por %p105, %p106
      %p108 = scmp.ne.s32.totalorder %s97, %s98
      %p109 = scmp.eq.s32.totalorder %s21, 0
      %p110 = por %p108, %p109
      %p111 = scmp.ne.s32.totalorder %s97, %s98
      %p112 = scmp.eq.s32.totalorder %s22, 1
      %p113 = por %p111, %p112
      %p115 = scmp.ne.s32.totalorder %s98, %s114
      %p116 = scmp.eq.s32.totalorder %s22, 0
      %p117 = por %p115, %p116
      %s118 = ssub.s32 %s23, %s35
      %p119 = scmp.eq.s32.totalorder %s118, 0
      %s121 = sadd.s32 %s120, 1
      %s122 = scalar_select %p119, %s120, %s121
      %p125 = pneg %p119
      %p126 = scmp.eq.s32.totalorder %s16, 1
      %p127 = por %p125, %p126
      %p128 = scmp.ne.s32.totalorder %s120, %s123
      %p129 = scmp.eq.s32.totalorder %s16, 0
      %p130 = por %p128, %p129
      %p131 = scmp.ne.s32.totalorder %s120, %s123
      %p132 = scmp.eq.s32.totalorder %s21, 1
      %p133 = por %p131, %p132
      %p134 = scmp.ne.s32.totalorder %s123, %s124
      %p135 = scmp.eq.s32.totalorder %s21, 0
      %p136 = por %p134, %p135
      %p137 = scmp.ne.s32.totalorder %s123, %s124
      %p138 = scmp.eq.s32.totalorder %s22, 1
      %p139 = por %p137, %p138
      %p141 = scmp.ne.s32.totalorder %s124, %s140
      %p142 = scmp.eq.s32.totalorder %s22, 0
      %p143 = por %p141, %p142
      %p144 = scmp.le.s32.totalorder 1, %s16
      %p145 = scmp.lt.s32.totalorder %s16, 3
      %p146 = pnand %p144, %p145
      %p147 = pneg %p146
      // Predicated region
      $region9: #{pcloss_pallas.1} parent=5 // pred_check
        _
      $region10: #{pcloss_pallas.1} parent=5 // pred_check_branch
        %149 = sbr.rel (%p146) target = $region12
      $region11: #{pcloss_pallas.1} parent=5 // pred_region
        %s150 = ssub.s32 %s16, 1
      $region12: #{pcloss_pallas.1} parent=5 // pred_fallthru
        _
      %p151 = scmp.lt.s32.totalorder %s16, 2
      // Predicated region
      $region13: #{pcloss_pallas.1} parent=5 // pred_check
        %p152 = pneg %p151
      $region14: #{pcloss_pallas.1} parent=5 // pred_check_branch
        %154 = sbr.rel (%p152) target = $region16
      $region15: #{pcloss_pallas.1} parent=5 // pred_region
        // Predicated region
        $region17: #{pcloss_pallas.1} parent=15 // pred_check
          %p155 = pneg %p50
        $region18: #{pcloss_pallas.1} parent=15 // pred_check_branch
          %157 = sbr.rel (%p155) target = $region20
        $region19: #{pcloss_pallas.1} parent=15 // pred_region
          %s158 = sand.u32 %s40, 1
          %s159 = scalar_lea.sflag [#allocation3], %s158
          %s160 = sand.u32 %s40, 1
          %s161 = smul.addr %s160, 4
          %s162 = scalar_lea.vmem [#allocation2], %s161
          %s164 = ssub.s32 64, 64
          %165 = vsyncadd %s159, %s164
          %s166 = sadd.s32 %s24, %s23
          %s167 = smul.addr %s166, 64
          %s168 = scalar_lea.hbm %s0, %s167
          %s170 = sshll.u32 %s162, 4
          %s171 = int_to_ptr.vmem [resolvable:$true] %s170
          %173 = dma.hbm_to_vmem [thread:$0]  %s168, 64, %s171, %s159
        $region20: #{pcloss_pallas.1} parent=15 // pred_fallthru
          _
        // Predicated region
        $region21: #{pcloss_pallas.1} parent=15 // pred_check
          %p174 = pneg %p78
        $region22: #{pcloss_pallas.1} parent=15 // pred_check_branch
          %176 = sbr.rel (%p174) target = $region24
        $region23: #{pcloss_pallas.1} parent=15 // pred_region
          %s177 = sand.u32 %s68, 1
          %s178 = scalar_lea.sflag [#allocation5], %s177
          %s179 = sand.u32 %s68, 1
          %s180 = smul.addr %s179, 4
          %s181 = scalar_lea.vmem [#allocation4], %s180
          %s183 = ssub.s32 64, 64
          %184 = vsyncadd %s178, %s183
          %s185 = sadd.s32 %s24, %s23
          %s186 = smul.addr %s185, 64
          %s187 = scalar_lea.hbm %s1, %s186
          %s189 = sshll.u32 %s181, 4
          %s190 = int_to_ptr.vmem [resolvable:$true] %s189
          %192 = dma.hbm_to_vmem [thread:$0]  %s187, 64, %s190, %s178
        $region24: #{pcloss_pallas.1} parent=15 // pred_fallthru
          _
      $region16: #{pcloss_pallas.1} parent=5 // pred_fallthru
        _
      %p193 = scmp.le.s32.totalorder 1, %s16
      %p194 = scmp.lt.s32.totalorder %s16, 3
      %p195 = pnand %p193, %p194
      %p196 = pneg %p195
      // Predicated region
      $region25: #{pcloss_pallas.1} parent=5 // pred_check
        _
      $region26: #{pcloss_pallas.1} parent=5 // pred_check_branch
        %198 = sbr.rel (%p195) target = $region28
      $region27: #{pcloss_pallas.1} parent=5 // pred_region
        %s199 = ssub.s32 %s16, 1
        %s200 = sand.u32 %s43, 1
        %s201 = scalar_lea.sflag [#allocation3], %s200
        %s202 = sand.u32 %s43, 1
        %s203 = smul.addr %s202, 4
        %s204 = scalar_lea.vmem [#allocation2], %s203
        // Predicated region
        $region29: #{pcloss_pallas.1} parent=27 // pred_check
          %p205 = pneg %p56
        $region30: #{pcloss_pallas.1} parent=27 // pred_check_branch
          %207 = sbr.rel (%p205) target = $region32
        $region31: #{pcloss_pallas.1} parent=27 // pred_region
          %208 = dma.done %s201, 64
        $region32: #{pcloss_pallas.1} parent=27 // pred_fallthru
          _
        %s209 = sand.u32 %s71, 1
        %s210 = scalar_lea.sflag [#allocation5], %s209
        %s211 = sand.u32 %s71, 1
        %s212 = smul.addr %s211, 4
        %s213 = scalar_lea.vmem [#allocation4], %s212
        // Predicated region
        $region33: #{pcloss_pallas.1} parent=27 // pred_check
          %p214 = pneg %p84
        $region34: #{pcloss_pallas.1} parent=27 // pred_check_branch
          %216 = sbr.rel (%p214) target = $region36
        $region35: #{pcloss_pallas.1} parent=27 // pred_region
          %217 = dma.done %s210, 64
        $region36: #{pcloss_pallas.1} parent=27 // pred_fallthru
          _
        %s218 = sand.u32 %s43, 1
        %s219 = scalar_lea.sflag [#allocation3], %s218
        %s220 = sand.u32 %s43, 1
        %s221 = smul.addr %s220, 4
        %s222 = scalar_lea.vmem [#allocation2], %s221
        %p223 = pneg %p56
        %p224 = pneg %p53
        %s225 = sand.u32 %s71, 1
        %s226 = scalar_lea.sflag [#allocation5], %s225
        %s227 = sand.u32 %s71, 1
        %s228 = smul.addr %s227, 4
        %s229 = scalar_lea.vmem [#allocation4], %s228
        %p230 = pneg %p84
        %p231 = pneg %p81
        %p232 = pneg %p110
        %p233 = pneg %p107
        %p234 = scmp.lt.s32.totalorder %s25, 1
        %s235 = scalar_select %p234, %s25, 1
        %s236 = smul.addr %s235, 4
        %s237 = scalar_lea.vmem %s2, %s236
        %p238 = pneg %p136
        %p239 = pneg %p133
        %p240 = scmp.lt.s32.totalorder %s25, 1
        %s241 = scalar_select %p240, %s25, 1
        %s242 = smul.addr %s241, 4
        %s243 = scalar_lea.vmem %s3, %s242
        %p244 = scmp.lt.s32.totalorder %s25, 1
        %s245 = scalar_select %p244, %s25, 1
        %s246 = smul.addr %s245, 4
        %s247 = scalar_lea.vmem %s2, %s246
        %p248 = scmp.lt.s32.totalorder %s25, 1
        %s249 = scalar_select %p248, %s25, 1
        %s250 = smul.addr %s249, 4
        %s251 = scalar_lea.vmem %s3, %s250
        %p252 = scmp.eq.s32.totalorder %s26, 0
        // Predicated region
        $region37: #{pcloss_pallas.1} parent=27 // pred_check
          %p253 = pneg %p252
        $region38: #{pcloss_pallas.1} parent=27 // pred_check_branch
          %255 = sbr.rel (%p253) target = $region40
        $region39: #{pcloss_pallas.1} parent=27 // pred_region
          %vm256 = vcmask 2048
          %257 = vst.msk [vmem:[%s247] sm:$0x7] %vm256, 0.0
          %vm258 = vcmask 3072
          %259 = vst.msk [vmem:[%s251] sm:$0xf] %vm258, 0.0
        $region40: #{pcloss_pallas.1} parent=27 // pred_fallthru
          _
        %v260 = vld [vmem:[%s204] sm:$0xf]
        %v261 = vld [vmem:[%s213] sm:$0xf]
        %v263 = vrot.slane %v260, 1
        %v265 = vsub.f32 %v260, %v263
        %v266 = vmax.f32 %v265, 0.0
        %v267 = vsub.f32 %v260, %v261
        %v268 = vand.u32 2147483647, %v267
        %vm269 = vcmp.lt.f32.partialorder %v268, 1.0
        %v270 = vmul.f32 %v267, 0.5
        %v271 = vmul.f32 %v270, %v267
        %v272 = vsub.f32 %v268, 0.5
        %v273 = vsel %vm269, %v271, %v272
        %v274 = vld [vmem:[%s247] sm:$0x7]
        %vm275 = vcmask 124928
        %v276 = vsel %vm275, %v266, 0.0
        %277 = vadd.xlane.f32.xlu0 %v276
        %v278 = vpop.xlane.xlu0 %277
        %v279 = vadd.f32 %v274, %v278
        %vm280 = vcmask 2048
        %281 = vst.msk [vmem:[%s247] sm:$0x7] %vm280, %v279
        %v282 = vld [vmem:[%s251] sm:$0xf]
        %vm283 = vcmask 125952
        %v284 = vsel %vm283, %v273, 0.0
        %285 = vadd.xlane.f32.xlu0 %v284
        %v286 = vpop.xlane.xlu0 %285
        %v287 = vadd.f32 %v282, %v286
        %vm288 = vcmask 3072
        %289 = vst.msk [vmem:[%s251] sm:$0xf] %vm288, %v287
        %p290 = scmp.lt.s32.totalorder %s25, 1
        %s291 = scalar_select %p290, %s25, 1
        %s292 = smul.addr %s291, 4
        %s293 = scalar_lea.vmem %s2, %s292
        %p294 = scmp.lt.s32.totalorder %s25, 1
        %s295 = scalar_select %p294, %s25, 1
        %s296 = smul.addr %s295, 4
        %s297 = scalar_lea.vmem %s3, %s296
        // Predicated region
        $region41: #{pcloss_pallas.1} parent=27 // pred_check
          %p298 = pneg %p107
        $region42: #{pcloss_pallas.1} parent=27 // pred_check_branch
          %300 = sbr.rel (%p298) target = $region44
        $region43: #{pcloss_pallas.1} parent=27 // pred_region
          _
        $region44: #{pcloss_pallas.1} parent=27 // pred_fallthru
          _
        // Predicated region
        $region45: #{pcloss_pallas.1} parent=27 // pred_check
          %p301 = pneg %p133
        $region46: #{pcloss_pallas.1} parent=27 // pred_check_branch
          %303 = sbr.rel (%p301) target = $region48
        $region47: #{pcloss_pallas.1} parent=27 // pred_region
          _
        $region48: #{pcloss_pallas.1} parent=27 // pred_fallthru
          _
      $region28: #{pcloss_pallas.1} parent=5 // pred_fallthru
        _
      %p304 = scmp.le.s32.totalorder 2, %s16
      // Predicated region
      $region49: #{pcloss_pallas.1} parent=5 // pred_check
        %p305 = pneg %p304
      $region50: #{pcloss_pallas.1} parent=5 // pred_check_branch
        %307 = sbr.rel (%p305) target = $region52
      $region51: #{pcloss_pallas.1} parent=5 // pred_region
        %s308 = ssub.s32 %s16, 2
        // Predicated region
        $region53: #{pcloss_pallas.1} parent=51 // pred_check
          %p309 = pneg %p113
        $region54: #{pcloss_pallas.1} parent=51 // pred_check_branch
          %311 = sbr.rel (%p309) target = $region56
        $region55: #{pcloss_pallas.1} parent=51 // pred_region
          %p312 = scmp.lt.s32.totalorder %s27, 1
          %s313 = scalar_select %p312, %s27, 1
          %s314 = smul.addr %s313, 4
          %s315 = scalar_lea.vmem %s2, %s314
        $region56: #{pcloss_pallas.1} parent=51 // pred_fallthru
          _
        // Predicated region
        $region57: #{pcloss_pallas.1} parent=51 // pred_check
          %p316 = pneg %p139
        $region58: #{pcloss_pallas.1} parent=51 // pred_check_branch
          %318 = sbr.rel (%p316) target = $region60
        $region59: #{pcloss_pallas.1} parent=51 // pred_region
          %p319 = scmp.lt.s32.totalorder %s27, 1
          %s320 = scalar_select %p319, %s27, 1
          %s321 = smul.addr %s320, 4
          %s322 = scalar_lea.vmem %s3, %s321
        $region60: #{pcloss_pallas.1} parent=51 // pred_fallthru
          _
      $region52: #{pcloss_pallas.1} parent=5 // pred_fallthru
        _
    $region6: #{pcloss_pallas.1} parent=1 // loop_footer
      %s20 = sadd.s32 1, %s16
    $region7: #{pcloss_pallas.1} parent=1 // loop_footer_branch
      %15 = sbr.rel target = $region3
    $region8: #{pcloss_pallas.1} parent=1 // loop_exit
      _
    %323 = vsyncpa [#allocation3], 1
    %s324 = scalar_lea.sflag [#allocation3], 1
    %325 = vsyncpa %s324, 1
    %326 = vsyncpa [#allocation5], 1
    %s327 = scalar_lea.sflag [#allocation5], 1
    %328 = vsyncpa %s327, 1

</llo_original>
